<compile_context>
chip_gen: v5e
topology: v5e:2x2
jax: 0.10.0
libtpu: 0.0.40
codegen_flags: <defaults>
</compile_context>

<pallas_src>
import jax
import jax.numpy as jnp
from jax.experimental import pallas as pl
from jax.experimental.pallas import tpu as pltpu


def _crelu_kernel(x_ref, o_ref):
    # x_ref: (tm, cols) tile of the flattened input
    # o_ref: (2, tm, cols) tile of the output (half 0: relu(x), half 1: relu(-x))
    x = x_ref[...]
    zero = jnp.zeros((), dtype=x.dtype)
    o_ref[0] = jnp.maximum(x, zero)
    o_ref[1] = jnp.maximum(-x, zero)


_COL_CANDIDATES = (2048, 1024, 512, 256, 128)
_TARGET_TILE_BYTES = 2 * 1024 * 1024  # input bytes per grid step (~6x that in VMEM)


def _sublane_pack(itemsize):
    # sub-32-bit dtypes pack along sublanes
    return {4: 8, 2: 16, 1: 32}.get(itemsize, 8)


def crelu(x):
    """CReLU: concat(relu(x), relu(-x)) along axis 0, implemented with Pallas."""
    orig_shape = x.shape
    assert x.ndim >= 1
    dtype = x.dtype
    itemsize = jnp.dtype(dtype).itemsize
    pack = _sublane_pack(itemsize)
    total = x.size

    flat = x.reshape(-1)

    # Lane-dense columns: a multiple of 128 dividing the flat size such that the
    # resulting row count is a multiple of the sublane pack.  Otherwise zero-pad.
    cols = None
    for cand in _COL_CANDIDATES:
        if total % cand == 0 and (total // cand) % pack == 0:
            cols = cand
            break
    pad = 0
    if cols is None:
        cols = 128
        chunk = pack * cols
        padded_total = -(-total // chunk) * chunk
        pad = padded_total - total
        flat = jnp.pad(flat, (0, pad))
    total_p = total + pad
    rows = total_p // cols
    flat = flat.reshape(rows, cols)

    # Row tile: largest multiple of `pack` that divides `rows`, targeting ~2 MiB of
    # input per grid step (=> ~12 MiB double-buffered: input + 2x output halves).
    target_rows = max(pack, (_TARGET_TILE_BYTES // (cols * itemsize)) // pack * pack)
    tm = pack
    t = (min(rows, target_rows) // pack) * pack
    while t >= pack:
        if rows % t == 0:
            tm = t
            break
        t -= pack

    # v7x megacore: keep at least 2 grid steps when possible so both TCs get work.
    if rows // tm == 1 and rows > pack:
        t = ((tm // 2) // pack) * pack
        while t >= pack:
            if rows % t == 0:
                tm = t
                break
            t -= pack

    grid = (rows // tm,)

    out_flat = pl.pallas_call(
        _crelu_kernel,
        out_shape=jax.ShapeDtypeStruct((2, rows, cols), dtype),
        grid_spec=pltpu.PrefetchScalarGridSpec(
            num_scalar_prefetch=0,
            grid=grid,
            in_specs=[pl.BlockSpec((tm, cols), lambda i: (i, 0))],
            out_specs=pl.BlockSpec((2, tm, cols), lambda i: (0, i, 0)),
        ),
        compiler_params=pltpu.CompilerParams(
            dimension_semantics=("parallel",),
            vmem_limit_bytes=32 * 1024 * 1024,
        ),
        cost_estimate=pl.CostEstimate(
            flops=2 * total_p,
            transcendentals=0,
            bytes_accessed=3 * total_p * itemsize,  # 1x read, 2x write: mem-bound
        ),
    )(flat)

    # (2, rows, cols) -> (2, total) -> (2*N, C, H, W)   (torch.cat along dim 0)
    out = out_flat.reshape(2, total_p)
    if pad:
        out = out[:, :total]
    new_shape = (2 * orig_shape[0],) + orig_shape[1:]
    return out.reshape(new_shape)


if __name__ == "__main__":
    key = jax.random.PRNGKey(0)
    # small NCHW input consistent with a conv-style activation module
    x = jax.random.normal(key, (2, 4, 16, 16), dtype=jnp.float32)

    out = jax.block_until_ready(crelu(x))

    # pure-JAX reference check
    ref = jnp.concatenate([jnp.maximum(x, 0.0), jnp.maximum(-x, 0.0)], axis=0)
    assert out.shape == (4, 4, 16, 16), out.shape
    assert jnp.allclose(out, ref), "mismatch vs reference"

    # awkward shape + bf16: exercises the zero-pad fallback path
    x2 = jax.random.normal(jax.random.PRNGKey(1), (3, 5, 7, 9), dtype=jnp.bfloat16)
    out2 = jax.block_until_ready(crelu(x2))
    ref2 = jnp.concatenate([jnp.maximum(x2, 0), jnp.maximum(-x2, 0)], axis=0)
    assert out2.shape == (6, 5, 7, 9), out2.shape
    assert jnp.allclose(out2.astype(jnp.float32), ref2.astype(jnp.float32)), "mismatch (padded path)"

    print("KERNEL_OK")
</pallas_src>

<mosaic_0001>
module attributes {stable_mosaic.version = 11 : i64} {
  func.func @_crelu_kernel(%arg0: i32, %arg1: memref<8x256xf32, #tpu.memory_space<vmem>>, %arg2: memref<2x8x256xf32, #tpu.memory_space<vmem>>) attributes {dimension_semantics = [#tpu.dimension_semantics<parallel>], iteration_bounds = array<i64: 1>, scalar_prefetch = 0 : i64, scratch_operands = 0 : i64, tpu.core_type = #tpu.core_type<tc>, window_params = [{transform_indices = @transform_0, window_bounds = array<i64: 8, 256>}, {transform_indices = @transform_1, window_bounds = array<i64: 2, 8, 256>}]} {
    %c0 = arith.constant 0 : index
    %c0_0 = arith.constant 0 : index
    %0 = vector.load %arg1[%c0, %c0_0] : memref<8x256xf32, #tpu.memory_space<vmem>>, vector<8x256xf32>
    %cst = arith.constant 0.000000e+00 : f32
    %1 = vector.broadcast %cst : f32 to vector<8x256xf32>
    %2 = arith.maximumf %0, %1 : vector<8x256xf32>
    %c0_1 = arith.constant 0 : index
    %c0_2 = arith.constant 0 : index
    %c0_3 = arith.constant 0 : index
    %3 = vector.load %arg2[%c0_1, %c0_2, %c0_3] : memref<2x8x256xf32, #tpu.memory_space<vmem>>, vector<1x8x256xf32>
    %4 = vector.shape_cast %3 : vector<1x8x256xf32> to vector<8x256xf32>
    %5 = vector.shape_cast %2 : vector<8x256xf32> to vector<1x8x256xf32>
    tpu.vector_store %arg2[%c0_1, %c0_2, %c0_3], %5 {strides = array<i32>} : memref<2x8x256xf32, #tpu.memory_space<vmem>>, vector<1x8x256xf32>,
    %cst_4 = arith.constant 0.000000e+00 : f32
    %6 = vector.broadcast %cst_4 : f32 to vector<8x256xf32>
    %7 = arith.subf %6, %0 : vector<8x256xf32>
    %cst_5 = arith.constant 0.000000e+00 : f32
    %8 = vector.broadcast %cst_5 : f32 to vector<8x256xf32>
    %9 = arith.maximumf %7, %8 : vector<8x256xf32>
    %c1 = arith.constant 1 : index
    %c0_6 = arith.constant 0 : index
    %c0_7 = arith.constant 0 : index
    %10 = vector.load %arg2[%c1, %c0_6, %c0_7] : memref<2x8x256xf32, #tpu.memory_space<vmem>>, vector<1x8x256xf32>
    %11 = vector.shape_cast %10 : vector<1x8x256xf32> to vector<8x256xf32>
    %12 = vector.shape_cast %9 : vector<8x256xf32> to vector<1x8x256xf32>
    tpu.vector_store %arg2[%c1, %c0_6, %c0_7], %12 {strides = array<i32>} : memref<2x8x256xf32, #tpu.memory_space<vmem>>, vector<1x8x256xf32>,
    return
  }
  func.func @transform_0(%arg0: i32) -> (i32, i32) {
    %c0_i32 = arith.constant 0 : i32
    %c0_i32_0 = arith.constant 0 : i32
    return %arg0, %c0_i32 : i32, i32
  }
  func.func @transform_1(%arg0: i32) -> (i32, i32, i32) {
    %c0_i32 = arith.constant 0 : i32
    %c0_i32_0 = arith.constant 0 : i32
    %c0_i32_1 = arith.constant 0 : i32
    return %c0_i32, %arg0, %c0_i32_0 : i32, i32, i32
  }
}

</mosaic_0001>

<llo_original>
// kernel: tpu_custom_call.1
$region0: #{tpu_custom_call.1}
  #allocation0 [shape = 'u32[]', space=smem, size = 0x4, offset = 0x4, fixed_abs, tag = 'smem constant byte address 0x4 - core index']
  #allocation1 [shape = 'u32[72,128]{1,0:T(1,128)}', space=vmem, size = 0x9000, scoped, tag = 'internal scratch']
  %s0 = inlined_call_operand.hbm [shape: f32[8,256], index: 0, kind: input, shape index: {}]
  %s1 = inlined_call_operand.hbm [shape: f32[2,8,256], index: 1, kind: output, shape index: {}]
  %s2 = sld [smem:[#allocation0]]
  $region18: #{tpu_custom_call.1} parent=0
    _
  %s4 = ssub.s32 1, %s2
  %s5 = scalar_select 0, %s4, %s2
  $region1: #{tpu_custom_call.1} parent=0
    #allocation2 [shape = 'u8[8192]{0}', space=vmem, size = 0x2000, scoped, tag = 'input window, operand 0, single buffered']
    #allocation3 [shape = 's32[1]{0}', space=sflag, size = 0x4, scoped, tag = 'scoped memory for tpu_custom_call.1']
    #allocation4 [shape = 's32[1]{0}', space=sflag, size = 0x4, scoped, tag = 'scoped memory for tpu_custom_call.1']
    #allocation5 [shape = 'u8[16384]{0}', space=vmem, size = 0x4000, scoped, tag = 'output window, operand 0, single buffered']
    %6 = vsyncpa [#allocation3], 0
    %7 = vsyncpa [#allocation4], 0
    // Predicated region
    $region2: #{tpu_custom_call.1} parent=1 // pred_check
      _
    $region3: #{tpu_custom_call.1} parent=1 // pred_check_branch
      %9 = sbr.rel (0) target = $region5
    $region4: #{tpu_custom_call.1} parent=1 // pred_region
      %11 = vsyncadd [#allocation3], 0
      %s13 = sshll.u32 %s0, 4
      %s14 = int_to_ptr.hbm [resolvable:$true] %s13
      %s15 = sshll.u32 [#allocation2], 4
      %s16 = int_to_ptr.vmem [resolvable:$true] %s15
      %18 = dma.hbm_to_vmem [thread:$0]  %s14, 256, %s16, [#allocation3]
    $region5: #{tpu_custom_call.1} parent=1 // pred_fallthru
      _
    // Predicated region
    $region6: #{tpu_custom_call.1} parent=1 // pred_check
      _
    $region7: #{tpu_custom_call.1} parent=1 // pred_check_branch
      %20 = sbr.rel (0) target = $region9
    $region8: #{tpu_custom_call.1} parent=1 // pred_region
      %22 = dma.done [#allocation3], 256
    $region9: #{tpu_custom_call.1} parent=1 // pred_fallthru
      _
    %v23 = vld [vmem:[#allocation2] sm:$0xff]
    %v24 = vld [vmem:[#allocation2 + $0x8] sm:$0xff]
    %v25 = vmax.f32 %v23, 0.0
    %v26 = vmax.f32 %v24, 0.0
    %27 = vst [vmem:[#allocation5] sm:$0xff] %v25
    %28 = vst [vmem:[#allocation5 + $0x8] sm:$0xff] %v26
    %v29 = vsub.f32 0.0, %v23
    %v30 = vsub.f32 0.0, %v24
    %v31 = vmax.f32 %v29, 0.0
    %v32 = vmax.f32 %v30, 0.0
    %s33 = scalar_lea.vmem [#allocation5], 16
    %34 = vst [vmem:[%s33] sm:$0xff] %v31
    %35 = vst [vmem:[%s33 + $0x8] sm:$0xff] %v32
    // Predicated region
    $region10: #{tpu_custom_call.1} parent=1 // pred_check
      _
    $region11: #{tpu_custom_call.1} parent=1 // pred_check_branch
      %37 = sbr.rel (0) target = $region13
    $region12: #{tpu_custom_call.1} parent=1 // pred_region
      %39 = vsyncadd [#allocation4], 0
      %s40 = sshll.u32 [#allocation5], 4
      %s41 = int_to_ptr.vmem [resolvable:$true] %s40
      %s42 = sshll.u32 %s1, 4
      %s43 = int_to_ptr.hbm [resolvable:$true] %s42
      %48 = dma.vmem_to_hbm [thread:$0]  %s41, 512, %s43, [#allocation4], 256, 256, 16
    $region13: #{tpu_custom_call.1} parent=1 // pred_fallthru
      _
    // Predicated region
    $region14: #{tpu_custom_call.1} parent=1 // pred_check
      _
    $region15: #{tpu_custom_call.1} parent=1 // pred_check_branch
      %50 = sbr.rel (0) target = $region17
    $region16: #{tpu_custom_call.1} parent=1 // pred_region
      %52 = dma.done [#allocation4], 512
    $region17: #{tpu_custom_call.1} parent=1 // pred_fallthru
      _
    %53 = vsyncpa [#allocation3], 1
    %54 = vsyncpa [#allocation4], 1

</llo_original>
